<compile_context>
chip_gen: v5e
topology: v5e:2x2
jax: 0.10.0
libtpu: 0.0.40
codegen_flags: <defaults>
</compile_context>

<pallas_src>
import functools

import jax
import jax.numpy as jnp
from jax import lax
from jax.experimental import pallas as pl
from jax.experimental.pallas import tpu as pltpu


# ---------------------------------------------------------------------------
# Kernel 1: conv-as-matmul (C_out, K) @ (K, TM) + fused per-channel
# sum / sum-of-squares reduction (feeds BatchNorm batch statistics).
# ---------------------------------------------------------------------------
def conv_stats_kernel(w_ref, p_ref, out_ref, sum_ref, sumsq_ref):
    si = pl.program_id(1)  # spatial-tile index (reduction axis for the stats)

    # (C_out, K) @ (K, TM) -> (C_out, TM); f32 accumulation on the MXU.
    acc = jnp.dot(w_ref[...], p_ref[...], preferred_element_type=jnp.float32)
    out_ref[...] = acc.astype(out_ref.dtype)

    @pl.when(si == 0)
    def _():
        sum_ref[...] = jnp.zeros_like(sum_ref)
        sumsq_ref[...] = jnp.zeros_like(sumsq_ref)

    # Padded (zero) columns contribute 0 to both sums, so stats stay exact.
    sum_ref[...] += jnp.sum(acc, axis=1, keepdims=True)
    sumsq_ref[...] += jnp.sum(acc * acc, axis=1, keepdims=True)


# ---------------------------------------------------------------------------
# Kernel 2: BatchNorm affine transform (pre-folded scale/shift) + LeakyReLU(0.1)
# Lane-dense (C_out, TM) blocks; scale/shift broadcast along lanes.
# ---------------------------------------------------------------------------
def bn_lrelu_kernel(y_ref, scale_ref, shift_ref, o_ref):
    z = y_ref[...].astype(jnp.float32) * scale_ref[...] + shift_ref[...]
    # LeakyReLU(0.1): max(z, 0.1*z) == z for z>=0, 0.1*z for z<0.
    o_ref[...] = jnp.maximum(z, 0.1 * z)


def _im2col_t(x, kh, kw, stride, padding, out_dtype):
    """x: (N, C, H, W) -> patches (N, C*KH*KW, OH*OW) with K ordered (c, kh, kw)."""
    n, c, h, w = x.shape
    xp = jnp.pad(x, ((0, 0), (0, 0), (padding, padding), (padding, padding)))
    oh = (h + 2 * padding - kh) // stride + 1
    ow = (w + 2 * padding - kw) // stride + 1
    cols = []
    for i in range(kh):
        for j in range(kw):
            cols.append(xp[:, :, i:i + (oh - 1) * stride + 1:stride,
                                 j:j + (ow - 1) * stride + 1:stride])  # (N,C,OH,OW)
    p = jnp.stack(cols, axis=2)                       # (N, C, KH*KW, OH, OW)
    p = p.reshape(n, c * kh * kw, oh * ow)            # K ordering matches OIHW weight
    return p.astype(out_dtype), oh, ow


def _pick_tile(s, k, c_out, in_bytes, mid_bytes, cap=2048, budget=20 * (1 << 20)):
    """Largest lane-dense spatial tile (multiple of 128, <= cap) whose double-buffered
    working set stays under a conservative VMEM budget."""
    lane = 128
    s_ceil = -(-s // lane) * lane
    tm = min(cap, s_ceil)

    def vmem_use(t):
        # double-buffered patch-in + conv-out blocks, plus the resident weight block.
        return 2 * t * (k * in_bytes + c_out * mid_bytes) + c_out * k * in_bytes

    while tm > lane and vmem_use(tm) > budget:
        tm -= lane
    return tm


@functools.partial(jax.jit,
                   static_argnames=("stride", "padding", "eps", "compute_dtype"))
def conv_layer_forward(x, weight, gamma, beta, *, stride=1, padding=1, eps=1e-5,
                       compute_dtype=jnp.bfloat16):
    """Forward pass of ConvLayer (training-mode BatchNorm).

    x      : (N, C_in, H, W)        float32, NCHW
    weight : (C_out, C_in, KH, KW)  float32 (PyTorch OIHW)
    gamma  : (C_out,)  BN weight
    beta   : (C_out,)  BN bias
    Returns (N, C_out, OH, OW) float32.
    """
    n, c_in, h, w = x.shape
    c_out, _, kh, kw = weight.shape

    patches, oh, ow = _im2col_t(x, kh, kw, stride, padding, compute_dtype)  # (N,K,S)
    k = c_in * kh * kw
    s = oh * ow
    w_mat = weight.reshape(c_out, k).astype(compute_dtype)                  # (C_out,K)

    mid_dtype = compute_dtype                      # conv intermediate precision
    in_bytes = jnp.dtype(compute_dtype).itemsize
    mid_bytes = jnp.dtype(mid_dtype).itemsize

    tm = _pick_tile(s, k, c_out, in_bytes, mid_bytes)
    s_pad = -(-s // tm) * tm
    if s_pad != s:
        patches = jnp.pad(patches, ((0, 0), (0, 0), (0, s_pad - s)))
    n_s_tiles = s_pad // tm

    # ---- Pallas call 1: conv matmul + per-channel (per-batch) stats --------
    conv_out, ch_sum, ch_sumsq = pl.pallas_call(
        conv_stats_kernel,
        out_shape=(
            jax.ShapeDtypeStruct((n, c_out, s_pad), mid_dtype),
            jax.ShapeDtypeStruct((n, c_out, 1), jnp.float32),
            jax.ShapeDtypeStruct((n, c_out, 1), jnp.float32),
        ),
        grid_spec=pltpu.PrefetchScalarGridSpec(
            num_scalar_prefetch=0,
            grid=(n, n_s_tiles),
            in_specs=[
                pl.BlockSpec((c_out, k), lambda b, i: (0, 0)),
                pl.BlockSpec((None, k, tm), lambda b, i: (b, 0, i)),
            ],
            out_specs=[
                pl.BlockSpec((None, c_out, tm), lambda b, i: (b, 0, i)),
                pl.BlockSpec((None, c_out, 1), lambda b, i: (b, 0, 0)),
                pl.BlockSpec((None, c_out, 1), lambda b, i: (b, 0, 0)),
            ],
        ),
        compiler_params=pltpu.CompilerParams(
            # batch axis parallel (megacore); stats accumulate over the spatial axis
            dimension_semantics=("parallel", "arbitrary")),
        cost_estimate=pl.CostEstimate(
            flops=2 * n * s_pad * k * c_out,
            transcendentals=0,
            bytes_accessed=(n * k * s_pad + c_out * k) * in_bytes
                           + n * c_out * s_pad * mid_bytes + n * c_out * 2 * 4),
    )(w_mat, patches)

    # ---- Fold BN batch stats (training-mode: biased variance) into scale/shift
    count = float(n * s)                                   # true element count (no pad)
    tot_sum = jnp.sum(ch_sum, axis=0)                      # (C_out, 1)
    tot_sumsq = jnp.sum(ch_sumsq, axis=0)                  # (C_out, 1)
    mean = tot_sum / count
    var = jnp.maximum(tot_sumsq / count - mean * mean, 0.0)  # cancellation guard
    inv_std = lax.rsqrt(var + eps)
    scale = gamma[:, None] * inv_std                       # (C_out, 1)
    shift = beta[:, None] - mean * scale                   # (C_out, 1)

    # ---- Pallas call 2: normalize + LeakyReLU (lane-dense, writes NCHW directly)
    out = pl.pallas_call(
        bn_lrelu_kernel,
        out_shape=jax.ShapeDtypeStruct((n, c_out, s_pad), jnp.float32),
        grid_spec=pltpu.PrefetchScalarGridSpec(
            num_scalar_prefetch=0,
            grid=(n, n_s_tiles),
            in_specs=[
                pl.BlockSpec((None, c_out, tm), lambda b, i: (b, 0, i)),
                pl.BlockSpec((c_out, 1), lambda b, i: (0, 0)),
                pl.BlockSpec((c_out, 1), lambda b, i: (0, 0)),
            ],
            out_specs=pl.BlockSpec((None, c_out, tm), lambda b, i: (b, 0, i)),
        ),
        compiler_params=pltpu.CompilerParams(
            dimension_semantics=("parallel", "parallel")),
        cost_estimate=pl.CostEstimate(
            flops=3 * n * s_pad * c_out,
            transcendentals=0,
            bytes_accessed=n * c_out * s_pad * (mid_bytes + 4) + 2 * c_out * 4),
    )(conv_out, scale, shift)

    if s_pad != s:
        out = out[:, :, :s]
    # (N, C_out, OH*OW) -> (N, C_out, OH, OW): pure reshape, no transpose pass.
    return out.reshape(n, c_out, oh, ow)


def _reference(x, weight, gamma, beta, stride, padding, eps=1e-5):
    """Pure-JAX reference mirroring PyTorch ConvLayer.forward (training-mode BN)."""
    y = lax.conv_general_dilated(
        x, weight, window_strides=(stride, stride),
        padding=((padding, padding), (padding, padding)),
        dimension_numbers=("NCHW", "OIHW", "NCHW"))
    mean = y.mean(axis=(0, 2, 3), keepdims=True)
    var = y.var(axis=(0, 2, 3), keepdims=True)            # biased, like BN training
    z = (y - mean) * lax.rsqrt(var + eps) * gamma[None, :, None, None] \
        + beta[None, :, None, None]
    return jnp.where(z >= 0, z, 0.1 * z)


if __name__ == "__main__":
    # ConvLayer(in_channel=4, out_channel=8, kernel_size=3, stride=1, padding=1)
    N, C_IN, H, W = 2, 4, 16, 16
    C_OUT, KH, KW = 8, 3, 3
    STRIDE, PADDING = 1, 1

    key = jax.random.PRNGKey(0)
    kx, kw_, kg, kb = jax.random.split(key, 4)
    x = jax.random.normal(kx, (N, C_IN, H, W), dtype=jnp.float32)
    weight = jax.random.normal(kw_, (C_OUT, C_IN, KH, KW), dtype=jnp.float32) * 0.1
    gamma = 1.0 + 0.1 * jax.random.normal(kg, (C_OUT,), dtype=jnp.float32)
    beta = 0.1 * jax.random.normal(kb, (C_OUT,), dtype=jnp.float32)

    ref = _reference(x, weight, gamma, beta, STRIDE, PADDING)

    # f32-operand path: tight check of the kernel logic against the reference.
    out_f32 = conv_layer_forward(x, weight, gamma, beta,
                                 stride=STRIDE, padding=PADDING,
                                 compute_dtype=jnp.float32)
    jax.block_until_ready(out_f32)
    assert out_f32.shape == (N, C_OUT, H, W), out_f32.shape
    assert jnp.allclose(out_f32, ref, atol=1e-4, rtol=1e-4), \
        float(jnp.max(jnp.abs(out_f32 - ref)))

    # bf16-operand path (default, MXU-native, halves both the patch-buffer and the
    # conv-intermediate HBM bytes): quantization error only -> looser tolerance.
    out_bf16 = conv_layer_forward(x, weight, gamma, beta,
                                  stride=STRIDE, padding=PADDING,
                                  compute_dtype=jnp.bfloat16)
    jax.block_until_ready(out_bf16)
    assert out_bf16.shape == (N, C_OUT, H, W), out_bf16.shape
    assert jnp.allclose(out_bf16, ref, atol=1e-1, rtol=5e-2), \
        float(jnp.max(jnp.abs(out_bf16 - ref)))

    print("KERNEL_OK")
</pallas_src>

<mosaic_0001>
module attributes {stable_mosaic.version = 11 : i64} {
  func.func @conv_stats_kernel(%arg0: i32, %arg1: i32, %arg2: memref<8x36xf32, #tpu.memory_space<vmem>>, %arg3: memref<1x36x256xf32, #tpu.memory_space<vmem>>, %arg4: memref<1x8x256xf32, #tpu.memory_space<vmem>>, %arg5: memref<1x8x1xf32, #tpu.memory_space<vmem>>, %arg6: memref<1x8x1xf32, #tpu.memory_space<vmem>>) attributes {dimension_semantics = [#tpu.dimension_semantics<parallel>, #tpu.dimension_semantics<arbitrary>], iteration_bounds = array<i64: 2, 1>, scalar_prefetch = 0 : i64, scratch_operands = 0 : i64, tpu.core_type = #tpu.core_type<tc>, window_params = [{pipeline_mode = #tpu.pipeline_mode<synchronous>, transform_indices = @transform_0, window_bounds = array<i64: 8, 36>}, {transform_indices = @transform_1, window_bounds = array<i64: 1, 36, 256>}, {transform_indices = @transform_2, window_bounds = array<i64: 1, 8, 256>}, {transform_indices = @transform_3, window_bounds = array<i64: 1, 8, 1>}, {transform_indices = @transform_4, window_bounds = array<i64: 1, 8, 1>}]} {
    %c0 = arith.constant 0 : index
    %c0_0 = arith.constant 0 : index
    %0 = vector.load %arg2[%c0, %c0_0] : memref<8x36xf32, #tpu.memory_space<vmem>>, vector<8x36xf32>
    %c0_1 = arith.constant 0 : index
    %c0_2 = arith.constant 0 : index
    %c0_3 = arith.constant 0 : index
    %1 = vector.load %arg3[%c0_1, %c0_2, %c0_3] : memref<1x36x256xf32, #tpu.memory_space<vmem>>, vector<1x36x256xf32>
    %2 = vector.shape_cast %1 : vector<1x36x256xf32> to vector<36x256xf32>
    %cst = arith.constant dense<0.000000e+00> : vector<8x256xf32>
    %3 = tpu.matmul %0, %2, %cst {dimension_numbers = #tpu.dot_dimension_numbers<[1], [0], [0], [1], [0, 0, 1, 1], [], []>} : vector<8x36xf32>, vector<36x256xf32>, vector<8x256xf32> -> vector<8x256xf32>
    %c0_4 = arith.constant 0 : index
    %c0_5 = arith.constant 0 : index
    %c0_6 = arith.constant 0 : index
    %4 = vector.load %arg4[%c0_4, %c0_5, %c0_6] : memref<1x8x256xf32, #tpu.memory_space<vmem>>, vector<1x8x256xf32>
    %5 = vector.shape_cast %4 : vector<1x8x256xf32> to vector<8x256xf32>
    %6 = vector.shape_cast %3 : vector<8x256xf32> to vector<1x8x256xf32>
    tpu.vector_store %arg4[%c0_4, %c0_5, %c0_6], %6 {strides = array<i32>} : memref<1x8x256xf32, #tpu.memory_space<vmem>>, vector<1x8x256xf32>,
    %c0_i32 = arith.constant 0 : i32
    %7 = arith.cmpi eq, %arg1, %c0_i32 : i32
    %8 = arith.extui %7 : i1 to i32
    %c0_i32_7 = arith.constant 0 : i32
    %9 = arith.cmpi ne, %8, %c0_i32_7 : i32
    scf.if %9 {
      %cst_22 = arith.constant 0.000000e+00 : f32
      %27 = vector.broadcast %cst_22 : f32 to vector<8x1xf32>
      %c0_23 = arith.constant 0 : index
      %c0_24 = arith.constant 0 : index
      %c0_25 = arith.constant 0 : index
      %28 = vector.load %arg5[%c0_23, %c0_24, %c0_25] : memref<1x8x1xf32, #tpu.memory_space<vmem>>, vector<1x8x1xf32>
      %29 = vector.shape_cast %28 : vector<1x8x1xf32> to vector<8x1xf32>
      %30 = vector.shape_cast %27 : vector<8x1xf32> to vector<1x8x1xf32>
      tpu.vector_store %arg5[%c0_23, %c0_24, %c0_25], %30 {strides = array<i32>} : memref<1x8x1xf32, #tpu.memory_space<vmem>>, vector<1x8x1xf32>,
      %cst_26 = arith.constant 0.000000e+00 : f32
      %31 = vector.broadcast %cst_26 : f32 to vector<8x1xf32>
      %c0_27 = arith.constant 0 : index
      %c0_28 = arith.constant 0 : index
      %c0_29 = arith.constant 0 : index
      %32 = vector.load %arg6[%c0_27, %c0_28, %c0_29] : memref<1x8x1xf32, #tpu.memory_space<vmem>>, vector<1x8x1xf32>
      %33 = vector.shape_cast %32 : vector<1x8x1xf32> to vector<8x1xf32>
      %34 = vector.shape_cast %31 : vector<8x1xf32> to vector<1x8x1xf32>
      tpu.vector_store %arg6[%c0_27, %c0_28, %c0_29], %34 {strides = array<i32>} : memref<1x8x1xf32, #tpu.memory_space<vmem>>, vector<1x8x1xf32>,
    } else {
    }
    %c0_8 = arith.constant 0 : index
    %c0_9 = arith.constant 0 : index
    %c0_10 = arith.constant 0 : index
    %10 = vector.load %arg5[%c0_8, %c0_9, %c0_10] : memref<1x8x1xf32, #tpu.memory_space<vmem>>, vector<1x8x1xf32>
    %11 = vector.shape_cast %10 : vector<1x8x1xf32> to vector<8x1xf32>
    %cst_11 = arith.constant dense<0.000000e+00> : vector<8xf32>
    %12 = vector.multi_reduction <add>, %3, %cst_11 [1] : vector<8x256xf32> to vector<8xf32>
    %13 = vector.shape_cast %12 : vector<8xf32> to vector<8x1xf32>
    %14 = arith.addf %11, %13 : vector<8x1xf32>
    %c0_12 = arith.constant 0 : index
    %c0_13 = arith.constant 0 : index
    %c0_14 = arith.constant 0 : index
    %15 = vector.load %arg5[%c0_12, %c0_13, %c0_14] : memref<1x8x1xf32, #tpu.memory_space<vmem>>, vector<1x8x1xf32>
    %16 = vector.shape_cast %15 : vector<1x8x1xf32> to vector<8x1xf32>
    %17 = vector.shape_cast %14 : vector<8x1xf32> to vector<1x8x1xf32>
    tpu.vector_store %arg5[%c0_12, %c0_13, %c0_14], %17 {strides = array<i32>} : memref<1x8x1xf32, #tpu.memory_space<vmem>>, vector<1x8x1xf32>,
    %c0_15 = arith.constant 0 : index
    %c0_16 = arith.constant 0 : index
    %c0_17 = arith.constant 0 : index
    %18 = vector.load %arg6[%c0_15, %c0_16, %c0_17] : memref<1x8x1xf32, #tpu.memory_space<vmem>>, vector<1x8x1xf32>
    %19 = vector.shape_cast %18 : vector<1x8x1xf32> to vector<8x1xf32>
    %20 = arith.mulf %3, %3 : vector<8x256xf32>
    %cst_18 = arith.constant dense<0.000000e+00> : vector<8xf32>
    %21 = vector.multi_reduction <add>, %20, %cst_18 [1] : vector<8x256xf32> to vector<8xf32>
    %22 = vector.shape_cast %21 : vector<8xf32> to vector<8x1xf32>
    %23 = arith.addf %19, %22 : vector<8x1xf32>
    %c0_19 = arith.constant 0 : index
    %c0_20 = arith.constant 0 : index
    %c0_21 = arith.constant 0 : index
    %24 = vector.load %arg6[%c0_19, %c0_20, %c0_21] : memref<1x8x1xf32, #tpu.memory_space<vmem>>, vector<1x8x1xf32>
    %25 = vector.shape_cast %24 : vector<1x8x1xf32> to vector<8x1xf32>
    %26 = vector.shape_cast %23 : vector<8x1xf32> to vector<1x8x1xf32>
    tpu.vector_store %arg6[%c0_19, %c0_20, %c0_21], %26 {strides = array<i32>} : memref<1x8x1xf32, #tpu.memory_space<vmem>>, vector<1x8x1xf32>,
    return
  }
  func.func @transform_0(%arg0: i32, %arg1: i32) -> (i32, i32) {
    %c0_i32 = arith.constant 0 : i32
    %c0_i32_0 = arith.constant 0 : i32
    %c0_i32_1 = arith.constant 0 : i32
    return %c0_i32, %c0_i32_0 : i32, i32
  }
  func.func @transform_1(%arg0: i32, %arg1: i32) -> (i32, i32, i32) {
    %c0_i32 = arith.constant 0 : i32
    %c0_i32_0 = arith.constant 0 : i32
    return %arg0, %c0_i32, %arg1 : i32, i32, i32
  }
  func.func @transform_2(%arg0: i32, %arg1: i32) -> (i32, i32, i32) {
    %c0_i32 = arith.constant 0 : i32
    %c0_i32_0 = arith.constant 0 : i32
    return %arg0, %c0_i32, %arg1 : i32, i32, i32
  }
  func.func @transform_3(%arg0: i32, %arg1: i32) -> (i32, i32, i32) {
    %c0_i32 = arith.constant 0 : i32
    %c0_i32_0 = arith.constant 0 : i32
    %c0_i32_1 = arith.constant 0 : i32
    return %arg0, %c0_i32, %c0_i32_0 : i32, i32, i32
  }
  func.func @transform_4(%arg0: i32, %arg1: i32) -> (i32, i32, i32) {
    %c0_i32 = arith.constant 0 : i32
    %c0_i32_0 = arith.constant 0 : i32
    %c0_i32_1 = arith.constant 0 : i32
    return %arg0, %c0_i32, %c0_i32_0 : i32, i32, i32
  }
}

module attributes {stable_mosaic.version = 11 : i64} {
  func.func @bn_lrelu_kernel(%arg0: i32, %arg1: i32, %arg2: memref<1x8x256xf32, #tpu.memory_space<vmem>>, %arg3: memref<8x1xf32, #tpu.memory_space<vmem>>, %arg4: memref<8x1xf32, #tpu.memory_space<vmem>>, %arg5: memref<1x8x256xf32, #tpu.memory_space<vmem>>) attributes {dimension_semantics = [#tpu.dimension_semantics<parallel>, #tpu.dimension_semantics<parallel>], iteration_bounds = array<i64: 2, 1>, scalar_prefetch = 0 : i64, scratch_operands = 0 : i64, tpu.core_type = #tpu.core_type<tc>, window_params = [{transform_indices = @transform_0, window_bounds = array<i64: 1, 8, 256>}, {pipeline_mode = #tpu.pipeline_mode<synchronous>, transform_indices = @transform_1, window_bounds = array<i64: 8, 1>}, {pipeline_mode = #tpu.pipeline_mode<synchronous>, transform_indices = @transform_2, window_bounds = array<i64: 8, 1>}, {transform_indices = @transform_3, window_bounds = array<i64: 1, 8, 256>}]} {
    %c0 = arith.constant 0 : index
    %c0_0 = arith.constant 0 : index
    %c0_1 = arith.constant 0 : index
    %0 = vector.load %arg2[%c0, %c0_0, %c0_1] : memref<1x8x256xf32, #tpu.memory_space<vmem>>, vector<1x8x256xf32>
    %1 = vector.shape_cast %0 : vector<1x8x256xf32> to vector<8x256xf32>
    %c0_2 = arith.constant 0 : index
    %c0_3 = arith.constant 0 : index
    %2 = vector.load %arg3[%c0_2, %c0_3] : memref<8x1xf32, #tpu.memory_space<vmem>>, vector<8x1xf32>
    %3 = vector.broadcast %2 : vector<8x1xf32> to vector<8x256xf32>
    %4 = arith.mulf %1, %3 : vector<8x256xf32>
    %c0_4 = arith.constant 0 : index
    %c0_5 = arith.constant 0 : index
    %5 = vector.load %arg4[%c0_4, %c0_5] : memref<8x1xf32, #tpu.memory_space<vmem>>, vector<8x1xf32>
    %6 = vector.broadcast %5 : vector<8x1xf32> to vector<8x256xf32>
    %7 = arith.addf %4, %6 : vector<8x256xf32>
    %cst = arith.constant 1.000000e-01 : f32
    %8 = vector.broadcast %cst : f32 to vector<8x256xf32>
    %9 = arith.mulf %8, %7 : vector<8x256xf32>
    %10 = arith.maximumf %7, %9 : vector<8x256xf32>
    %c0_6 = arith.constant 0 : index
    %c0_7 = arith.constant 0 : index
    %c0_8 = arith.constant 0 : index
    %11 = vector.load %arg5[%c0_6, %c0_7, %c0_8] : memref<1x8x256xf32, #tpu.memory_space<vmem>>, vector<1x8x256xf32>
    %12 = vector.shape_cast %11 : vector<1x8x256xf32> to vector<8x256xf32>
    %13 = vector.shape_cast %10 : vector<8x256xf32> to vector<1x8x256xf32>
    tpu.vector_store %arg5[%c0_6, %c0_7, %c0_8], %13 {strides = array<i32>} : memref<1x8x256xf32, #tpu.memory_space<vmem>>, vector<1x8x256xf32>,
    return
  }
  func.func @transform_0(%arg0: i32, %arg1: i32) -> (i32, i32, i32) {
    %c0_i32 = arith.constant 0 : i32
    %c0_i32_0 = arith.constant 0 : i32
    return %arg0, %c0_i32, %arg1 : i32, i32, i32
  }
  func.func @transform_1(%arg0: i32, %arg1: i32) -> (i32, i32) {
    %c0_i32 = arith.constant 0 : i32
    %c0_i32_0 = arith.constant 0 : i32
    %c0_i32_1 = arith.constant 0 : i32
    return %c0_i32, %c0_i32_0 : i32, i32
  }
  func.func @transform_2(%arg0: i32, %arg1: i32) -> (i32, i32) {
    %c0_i32 = arith.constant 0 : i32
    %c0_i32_0 = arith.constant 0 : i32
    %c0_i32_1 = arith.constant 0 : i32
    return %c0_i32, %c0_i32_0 : i32, i32
  }
  func.func @transform_3(%arg0: i32, %arg1: i32) -> (i32, i32, i32) {
    %c0_i32 = arith.constant 0 : i32
    %c0_i32_0 = arith.constant 0 : i32
    return %arg0, %c0_i32, %arg1 : i32, i32, i32
  }
}

</mosaic_0001>

<llo_original>
// kernel: conv_layer_forward.2
$region0: #{conv_layer_forward.2}
  #allocation0 [shape = 'u32[]', space=smem, size = 0x4, offset = 0x4, fixed_abs, tag = 'smem constant byte address 0x4 - core index']
  #allocation1 [shape = 'u32[72,128]{1,0:T(1,128)}', space=vmem, size = 0x9000, scoped, tag = 'internal scratch']
  %s0 = inlined_call_operand.vmem [shape: f32[8,36], index: 0, kind: input, shape index: {}]
  %s1 = inlined_call_operand.vmem [shape: f32[2,36,256], index: 1, kind: input, shape index: {}]
  %s2 = inlined_call_operand.vmem [shape: f32[2,8,256], index: 2, kind: output, shape index: {0}]
  %s3 = inlined_call_operand.vmem [shape: f32[2,8,1], index: 3, kind: output, shape index: {1}]
  %s4 = inlined_call_operand.vmem [shape: f32[2,8,1], index: 4, kind: output, shape index: {2}]
  %5 = xla_tuple %s2, %s3, %s4
  %s6 = sld [smem:[#allocation0]]
  $region61: #{conv_layer_forward.2} parent=0
    _
  %s8 = ssub.s32 1, %s6
  %s9 = scalar_select 0, %s8, %s6
  loop: start=0, step=1, limit=4
  $region2: #{conv_layer_forward.2} parent=0 // loop_pre_header
    _
  $region3: #{conv_layer_forward.2} parent=0 // loop_header
    %s11 = sphi 0, %s15
    %p12 = scmp.ge.s32.totalorder %s11, 4
    %s18 = sphi 0, %s30
    %s19 = sphi 0, %s26
    %s20 = sphi 0, %s18
    %s21 = sphi 0, %s19
    %s22 = sphi 0, %s20
    %s23 = sphi 0, %s21
    %s31 = sphi 0, %s31
    %s33 = sphi 0, %s31
    %s34 = sphi 0, %s33
    %s48 = sphi 0, %s34
    %s56 = sphi 0, %s58
    %s59 = sphi 0, %s56
    %s60 = sphi 0, %s59
    %s76 = sphi 0, %s60
    %s84 = sphi 0, %s86
    %s87 = sphi 0, %s84
    %s88 = sphi 0, %s87
    %s104 = sphi 0, %s88
    %s110 = sphi 0, %s112
    %s113 = sphi 0, %s110
    %s114 = sphi 0, %s113
    %s130 = sphi 0, %s114
    %s136 = sphi 0, %s138
    %s139 = sphi 0, %s136
    %s140 = sphi 0, %s139
    %s156 = sphi 0, %s140
  $region4: #{conv_layer_forward.2} parent=0 // loop_header_branch
    %14 = sbr.rel (%p12) target = $region8
  $region5: #{conv_layer_forward.2} parent=0 // loop_body
    %s16 = ssub.s32 %s11, 1
    %s17 = ssub.s32 %s11, 2
    %s24 = sadd.s32 1, %s19
    %p25 = scmp.ge.s32.totalorder %s24, 1
    %s26 = scalar_select %p25, 0, %s24
    %s27 = sadd.s32 1, %s18
    %s28 = scalar_select %p25, %s27, %s18
    %p29 = scmp.ge.s32.totalorder %s28, 2
    %s30 = scalar_select %p29, 0, %s28
    %s32 = sadd.s32 %s31, 1
    %p35 = scmp.eq.s32.totalorder %s11, 1
    %p36 = scmp.ne.s32.totalorder %s31, %s33
    %p37 = scmp.eq.s32.totalorder %s11, 0
    %p38 = por %p36, %p37
    %p39 = scmp.ne.s32.totalorder %s31, %s33
    %p40 = scmp.eq.s32.totalorder %s16, 1
    %p41 = por %p39, %p40
    %p42 = scmp.ne.s32.totalorder %s33, %s34
    %p43 = scmp.eq.s32.totalorder %s16, 0
    %p44 = por %p42, %p43
    %p45 = scmp.ne.s32.totalorder %s33, %s34
    %p46 = scmp.eq.s32.totalorder %s17, 1
    %p47 = por %p45, %p46
    %p49 = scmp.ne.s32.totalorder %s34, %s48
    %p50 = scmp.eq.s32.totalorder %s17, 0
    %p51 = por %p49, %p50
    %s52 = ssub.s32 %s18, %s30
    %s53 = ssub.s32 %s19, %s26
    %s54 = sor.u32 %s52, %s53
    %p55 = scmp.eq.s32.totalorder %s54, 0
    %s57 = sadd.s32 %s56, 1
    %s58 = scalar_select %p55, %s56, %s57
    %p61 = pneg %p55
    %p62 = scmp.eq.s32.totalorder %s11, 1
    %p63 = por %p61, %p62
    %p64 = scmp.ne.s32.totalorder %s56, %s59
    %p65 = scmp.eq.s32.totalorder %s11, 0
    %p66 = por %p64, %p65
    %p67 = scmp.ne.s32.totalorder %s56, %s59
    %p68 = scmp.eq.s32.totalorder %s16, 1
    %p69 = por %p67, %p68
    %p70 = scmp.ne.s32.totalorder %s59, %s60
    %p71 = scmp.eq.s32.totalorder %s16, 0
    %p72 = por %p70, %p71
    %p73 = scmp.ne.s32.totalorder %s59, %s60
    %p74 = scmp.eq.s32.totalorder %s17, 1
    %p75 = por %p73, %p74
    %p77 = scmp.ne.s32.totalorder %s60, %s76
    %p78 = scmp.eq.s32.totalorder %s17, 0
    %p79 = por %p77, %p78
    %s80 = ssub.s32 %s18, %s30
    %s81 = ssub.s32 %s19, %s26
    %s82 = sor.u32 %s80, %s81
    %p83 = scmp.eq.s32.totalorder %s82, 0
    %s85 = sadd.s32 %s84, 1
    %s86 = scalar_select %p83, %s84, %s85
    %p89 = pneg %p83
    %p90 = scmp.eq.s32.totalorder %s11, 1
    %p91 = por %p89, %p90
    %p92 = scmp.ne.s32.totalorder %s84, %s87
    %p93 = scmp.eq.s32.totalorder %s11, 0
    %p94 = por %p92, %p93
    %p95 = scmp.ne.s32.totalorder %s84, %s87
    %p96 = scmp.eq.s32.totalorder %s16, 1
    %p97 = por %p95, %p96
    %p98 = scmp.ne.s32.totalorder %s87, %s88
    %p99 = scmp.eq.s32.totalorder %s16, 0
    %p100 = por %p98, %p99
    %p101 = scmp.ne.s32.totalorder %s87, %s88
    %p102 = scmp.eq.s32.totalorder %s17, 1
    %p103 = por %p101, %p102
    %p105 = scmp.ne.s32.totalorder %s88, %s104
    %p106 = scmp.eq.s32.totalorder %s17, 0
    %p107 = por %p105, %p106
    %s108 = ssub.s32 %s18, %s30
    %p109 = scmp.eq.s32.totalorder %s108, 0
    %s111 = sadd.s32 %s110, 1
    %s112 = scalar_select %p109, %s110, %s111
    %p115 = pneg %p109
    %p116 = scmp.eq.s32.totalorder %s11, 1
    %p117 = por %p115, %p116
    %p118 = scmp.ne.s32.totalorder %s110, %s113
    %p119 = scmp.eq.s32.totalorder %s11, 0
    %p120 = por %p118, %p119
    %p121 = scmp.ne.s32.totalorder %s110, %s113
    %p122 = scmp.eq.s32.totalorder %s16, 1
    %p123 = por %p121, %p122
    %p124 = scmp.ne.s32.totalorder %s113, %s114
    %p125 = scmp.eq.s32.totalorder %s16, 0
    %p126 = por %p124, %p125
    %p127 = scmp.ne.s32.totalorder %s113, %s114
    %p128 = scmp.eq.s32.totalorder %s17, 1
    %p129 = por %p127, %p128
    %p131 = scmp.ne.s32.totalorder %s114, %s130
    %p132 = scmp.eq.s32.totalorder %s17, 0
    %p133 = por %p131, %p132
    %s134 = ssub.s32 %s18, %s30
    %p135 = scmp.eq.s32.totalorder %s134, 0
    %s137 = sadd.s32 %s136, 1
    %s138 = scalar_select %p135, %s136, %s137
    %p141 = pneg %p135
    %p142 = scmp.eq.s32.totalorder %s11, 1
    %p143 = por %p141, %p142
    %p144 = scmp.ne.s32.totalorder %s136, %s139
    %p145 = scmp.eq.s32.totalorder %s11, 0
    %p146 = por %p144, %p145
    %p147 = scmp.ne.s32.totalorder %s136, %s139
    %p148 = scmp.eq.s32.totalorder %s16, 1
    %p149 = por %p147, %p148
    %p150 = scmp.ne.s32.totalorder %s139, %s140
    %p151 = scmp.eq.s32.totalorder %s16, 0
    %p152 = por %p150, %p151
    %p153 = scmp.ne.s32.totalorder %s139, %s140
    %p154 = scmp.eq.s32.totalorder %s17, 1
    %p155 = por %p153, %p154
    %p157 = scmp.ne.s32.totalorder %s140, %s156
    %p158 = scmp.eq.s32.totalorder %s17, 0
    %p159 = por %p157, %p158
    %p160 = scmp.le.s32.totalorder 1, %s11
    %p161 = scmp.lt.s32.totalorder %s11, 3
    %p162 = pnand %p160, %p161
    %p163 = pneg %p162
    // Predicated region
    $region9: #{conv_layer_forward.2} parent=5 // pred_check
      _
    $region10: #{conv_layer_forward.2} parent=5 // pred_check_branch
      %165 = sbr.rel (%p162) target = $region12
    $region11: #{conv_layer_forward.2} parent=5 // pred_region
      %s166 = ssub.s32 %s11, 1
      // Predicated region
      $region13: #{conv_layer_forward.2} parent=11 // pred_check
        %p167 = pneg %p44
      $region14: #{conv_layer_forward.2} parent=11 // pred_check_branch
        %169 = sbr.rel (%p167) target = $region16
      $region15: #{conv_layer_forward.2} parent=11 // pred_region
        _
      $region16: #{conv_layer_forward.2} parent=11 // pred_fallthru
        _
    $region12: #{conv_layer_forward.2} parent=5 // pred_fallthru
      _
    %p170 = scmp.lt.s32.totalorder %s11, 2
    // Predicated region
    $region17: #{conv_layer_forward.2} parent=5 // pred_check
      %p171 = pneg %p170
    $region18: #{conv_layer_forward.2} parent=5 // pred_check_branch
      %173 = sbr.rel (%p171) target = $region20
    $region19: #{conv_layer_forward.2} parent=5 // pred_region
      // Predicated region
      $region21: #{conv_layer_forward.2} parent=19 // pred_check
        %p174 = pneg %p66
      $region22: #{conv_layer_forward.2} parent=19 // pred_check_branch
        %176 = sbr.rel (%p174) target = $region24
      $region23: #{conv_layer_forward.2} parent=19 // pred_region
        %s177 = smul.u32 2, %s19
        %p178 = scmp.lt.s32.totalorder %s18, 1
        %s179 = scalar_select %p178, %s18, 1
        %p180 = scmp.lt.s32.totalorder %s177, 1
        %s181 = scalar_select %p180, %s177, 1
        %s182 = smul.addr %s179, 10
        %s183 = sadd.s32 %s181, %s182
        %s184 = smul.addr %s183, 8
        %s185 = scalar_lea.vmem %s1, %s184
        %s186 = smul.u32 2, %s19
      $region24: #{conv_layer_forward.2} parent=19 // pred_fallthru
        _
    $region20: #{conv_layer_forward.2} parent=5 // pred_fallthru
      _
    %p187 = scmp.le.s32.totalorder 1, %s11
    %p188 = scmp.lt.s32.totalorder %s11, 3
    %p189 = pnand %p187, %p188
    %p190 = pneg %p189
    // Predicated region
    $region25: #{conv_layer_forward.2} parent=5 // pred_check
      _
    $region26: #{conv_layer_forward.2} parent=5 // pred_check_branch
      %192 = sbr.rel (%p189) target = $region28
    $region27: #{conv_layer_forward.2} parent=5 // pred_region
      %s193 = ssub.s32 %s11, 1
      %p194 = pneg %p44
      %p195 = pneg %p41
      %s196 = smul.u32 2, %s21
      %p197 = scmp.lt.s32.totalorder %s20, 1
      %s198 = scalar_select %p197, %s20, 1
      %p199 = scmp.lt.s32.totalorder %s196, 1
      %s200 = scalar_select %p199, %s196, 1
      %s201 = smul.addr %s198, 10
      %s202 = sadd.s32 %s200, %s201
      %s203 = smul.addr %s202, 8
      %s204 = scalar_lea.vmem %s1, %s203
      %p205 = pneg %p72
      %p206 = pneg %p69
      %p207 = pneg %p100
      %p208 = pneg %p97
      %s209 = smul.u32 2, %s21
      %p210 = scmp.lt.s32.totalorder %s20, 1
      %s211 = scalar_select %p210, %s20, 1
      %p212 = scmp.lt.s32.totalorder %s209, 1
      %s213 = scalar_select %p212, %s209, 1
      %s214 = smul.addr %s211, 2
      %s215 = sadd.s32 %s213, %s214
      %s216 = smul.addr %s215, 8
      %s217 = scalar_lea.vmem %s2, %s216
      %p218 = pneg %p126
      %p219 = pneg %p123
      %p220 = scmp.lt.s32.totalorder %s20, 1
      %s221 = scalar_select %p220, %s20, 1
      %s222 = smul.addr %s221, 8
      %s223 = scalar_lea.vmem %s3, %s222
      %p224 = pneg %p152
      %p225 = pneg %p149
      %p226 = scmp.lt.s32.totalorder %s20, 1
      %s227 = scalar_select %p226, %s20, 1
      %s228 = smul.addr %s227, 8
      %s229 = scalar_lea.vmem %s4, %s228
      %s230 = smul.u32 2, %s21
      %p231 = scmp.lt.s32.totalorder %s20, 1
      %s232 = scalar_select %p231, %s20, 1
      %p233 = scmp.lt.s32.totalorder %s230, 1
      %s234 = scalar_select %p233, %s230, 1
      %s235 = smul.addr %s232, 10
      %s236 = sadd.s32 %s234, %s235
      %s237 = smul.addr %s236, 8
      %s238 = scalar_lea.vmem %s1, %s237
      %s239 = smul.u32 2, %s21
      %s240 = smul.u32 2, %s21
      %p241 = scmp.lt.s32.totalorder %s20, 1
      %s242 = scalar_select %p241, %s20, 1
      %p243 = scmp.lt.s32.totalorder %s240, 1
      %s244 = scalar_select %p243, %s240, 1
      %s245 = smul.addr %s242, 2
      %s246 = sadd.s32 %s244, %s245
      %s247 = smul.addr %s246, 8
      %s248 = scalar_lea.vmem %s2, %s247
      %s249 = smul.u32 2, %s21
      %p250 = scmp.lt.s32.totalorder %s20, 1
      %s251 = scalar_select %p250, %s20, 1
      %s252 = smul.addr %s251, 8
      %s253 = scalar_lea.vmem %s3, %s252
      %p254 = scmp.lt.s32.totalorder %s20, 1
      %s255 = scalar_select %p254, %s20, 1
      %s256 = smul.addr %s255, 8
      %s257 = scalar_lea.vmem %s4, %s256
      %v258 = vld [vmem:[%s0] sm:$0xff]
      %v259 = vld [vmem:[%s238] sm:$0xff]
      %v260 = vld [vmem:[%s238 + $0x8] sm:$0xff]
      %v261 = vld [vmem:[%s238 + $0x10] sm:$0xff]
      %v262 = vld [vmem:[%s238 + $0x18] sm:$0xff]
      %v263 = vld [vmem:[%s238 + $0x20] sm:$0xff]
      %v264 = vld [vmem:[%s238 + $0x28] sm:$0xff]
      %v265 = vld [vmem:[%s238 + $0x30] sm:$0xff]
      %v266 = vld [vmem:[%s238 + $0x38] sm:$0xff]
      %v267 = vld [vmem:[%s238 + $0x40] sm:$0xf]
      %v268 = vld [vmem:[%s238 + $0x48] sm:$0xf]
      %vm269 = vcmask 293888
      %v271 = vsel %vm269, %v258, 0
      %vm273 = vcmask 1043456
      %v275 = vsel %vm273, %v267, 0
      %v278 = vsel %vm273, %v268, 0
      %280 = vmatpush.msra.mxu0 0.0
      %281 = vmatpush.msra.mxu0 0.0
      %282 = vmatpush.msra.mxu0 0.0
      %283 = vmatpush.msra.mxu0 0.0
      %284 = vmatpush.msra.mxu0 0.0
      %285 = vmatpush.msra.mxu0 0.0
      %286 = vmatpush.msra.mxu0 0.0
      %287 = vmatpush.msra.mxu0 0.0
      %288 = vmatpush.msra.mxu0 0.0
      %289 = vmatpush.msra.mxu0 0.0
      %290 = vmatpush.msra.mxu0 0.0
      %291 = vmatpush.msra.mxu0 %v275
      %292 = vmatpush.msra.mxu0 %v265
      %293 = vmatpush.msra.mxu0 %v263
      %294 = vmatpush.msra.mxu0 %v261
      %295 = vmatpush.msra.mxu0 %v259
      %296 = vmatmul.f32.gmra.mxu0 %v271
      %v297 = vpop.f32.mrf.mxu0
      %v298 = vadd.f32 0.0, %v297
      %299 = vdwg.mxu0
      %300 = vmatpush.msra.mxu0 0.0
      %301 = vmatpush.msra.mxu0 0.0
      %302 = vmatpush.msra.mxu0 0.0
      %303 = vmatpush.msra.mxu0 0.0
      %304 = vmatpush.msra.mxu0 0.0
      %305 = vmatpush.msra.mxu0 0.0
      %306 = vmatpush.msra.mxu0 0.0
      %307 = vmatpush.msra.mxu0 0.0
      %308 = vmatpush.msra.mxu0 0.0
      %309 = vmatpush.msra.mxu0 0.0
      %310 = vmatpush.msra.mxu0 0.0
      %311 = vmatpush.msra.mxu0 %v278
      %312 = vmatpush.msra.mxu0 %v266
      %313 = vmatpush.msra.mxu0 %v264
      %314 = vmatpush.msra.mxu0 %v262
      %315 = vmatpush.msra.mxu0 %v260
      %316 = vmatmul.f32.gmra.mxu0 %v271
      %v317 = vpop.f32.mrf.mxu0
      %v318 = vadd.f32 0.0, %v317
      %319 = vdwg.mxu0
      %320 = vst [vmem:[%s248] sm:$0xff] %v298
      %321 = vst [vmem:[%s248 + $0x8] sm:$0xff] %v318
      %p322 = scmp.eq.s32.totalorder %s21, 0
      // Predicated region
      $region29: #{conv_layer_forward.2} parent=27 // pred_check
        %p323 = pneg %p322
      $region30: #{conv_layer_forward.2} parent=27 // pred_check_branch
        %325 = sbr.rel (%p323) target = $region32
      $region31: #{conv_layer_forward.2} parent=27 // pred_region
        %vm326 = vcmask 7168
        %327 = vst.msk [vmem:[%s253] sm:$0xff] %vm326, 0.0
        %328 = vst.msk [vmem:[%s257] sm:$0xff] %vm326, 0.0
      $region32: #{conv_layer_forward.2} parent=27 // pred_fallthru
        _
      %v329 = vld [vmem:[%s253] sm:$0xff]
      %v330 = vadd.f32 %v298, %v318
      %331 = vadd.xlane.f32.xlu0 %v330
      %v332 = vpop.xlane.xlu0 %331
      %v333 = vadd.f32 %v329, %v332
      %vm334 = vcmask 7168
      %335 = vst.msk [vmem:[%s253] sm:$0xff] %vm334, %v333
      %v336 = vld [vmem:[%s257] sm:$0xff]
      %v337 = vmul.f32 %v298, %v298
      %v338 = vmul.f32 %v318, %v318
      %v339 = vadd.f32 %v337, %v338
      %340 = vadd.xlane.f32.xlu0 %v339
      %v341 = vpop.xlane.xlu0 %340
      %v342 = vadd.f32 %v336, %v341
      %343 = vst.msk [vmem:[%s257] sm:$0xff] %vm334, %v342
      %s344 = smul.u32 2, %s21
      %p345 = scmp.lt.s32.totalorder %s20, 1
      %s346 = scalar_select %p345, %s20, 1
      %p347 = scmp.lt.s32.totalorder %s344, 1
      %s348 = scalar_select %p347, %s344, 1
      %s349 = smul.addr %s346, 2
      %s350 = sadd.s32 %s348, %s349
      %s351 = smul.addr %s350, 8
      %s352 = scalar_lea.vmem %s2, %s351
      %p353 = scmp.lt.s32.totalorder %s20, 1
      %s354 = scalar_select %p353, %s20, 1
      %s355 = smul.addr %s354, 8
      %s356 = scalar_lea.vmem %s3, %s355
      %p357 = scmp.lt.s32.totalorder %s20, 1
      %s358 = scalar_select %p357, %s20, 1
      %s359 = smul.addr %s358, 8
      %s360 = scalar_lea.vmem %s4, %s359
      // Predicated region
      $region33: #{conv_layer_forward.2} parent=27 // pred_check
        %p361 = pneg %p97
      $region34: #{conv_layer_forward.2} parent=27 // pred_check_branch
        %363 = sbr.rel (%p361) target = $region36
      $region35: #{conv_layer_forward.2} parent=27 // pred_region
        %s364 = smul.u32 2, %s21
      $region36: #{conv_layer_forward.2} parent=27 // pred_fallthru
        _
      // Predicated region
      $region37: #{conv_layer_forward.2} parent=27 // pred_check
        %p365 = pneg %p123
      $region38: #{conv_layer_forward.2} parent=27 // pred_check_branch
        %367 = sbr.rel (%p365) target = $region40
      $region39: #{conv_layer_forward.2} parent=27 // pred_region
        _
      $region40: #{conv_layer_forward.2} parent=27 // pred_fallthru
        _
      // Predicated region
      $region41: #{conv_layer_forward.2} parent=27 // pred_check
        %p368 = pneg %p149
      $region42: #{conv_layer_forward.2} parent=27 // pred_check_branch
        %370 = sbr.rel (%p368) target = $region44
      $region43: #{conv_layer_forward.2} parent=27 // pred_region
        _
      $region44: #{conv_layer_forward.2} parent=27 // pred_fallthru
        _
    $region28: #{conv_layer_forward.2} parent=5 // pred_fallthru
      _
    %p371 = scmp.le.s32.totalorder 2, %s11
    // Predicated region
    $region45: #{conv_layer_forward.2} parent=5 // pred_check
      %p372 = pneg %p371
    $region46: #{conv_layer_forward.2} parent=5 // pred_check_branch
      %374 = sbr.rel (%p372) target = $region48
    $region47: #{conv_layer_forward.2} parent=5 // pred_region
      %s375 = ssub.s32 %s11, 2
      // Predicated region
      $region49: #{conv_layer_forward.2} parent=47 // pred_check
        %p376 = pneg %p103
      $region50: #{conv_layer_forward.2} parent=47 // pred_check_branch
        %378 = sbr.rel (%p376) target = $region52
      $region51: #{conv_layer_forward.2} parent=47 // pred_region
        %s379 = smul.u32 2, %s23
        %p380 = scmp.lt.s32.totalorder %s22, 1
        %s381 = scalar_select %p380, %s22, 1
        %p382 = scmp.lt.s32.totalorder %s379, 1
        %s383 = scalar_select %p382, %s379, 1
        %s384 = smul.addr %s381, 2
        %s385 = sadd.s32 %s383, %s384
        %s386 = smul.addr %s385, 8
        %s387 = scalar_lea.vmem %s2, %s386
      $region52: #{conv_layer_forward.2} parent=47 // pred_fallthru
        _
      // Predicated region
      $region53: #{conv_layer_forward.2} parent=47 // pred_check
        %p388 = pneg %p129
      $region54: #{conv_layer_forward.2} parent=47 // pred_check_branch
        %390 = sbr.rel (%p388) target = $region56
      $region55: #{conv_layer_forward.2} parent=47 // pred_region
        %p391 = scmp.lt.s32.totalorder %s22, 1
        %s392 = scalar_select %p391, %s22, 1
        %s393 = smul.addr %s392, 8
        %s394 = scalar_lea.vmem %s3, %s393
      $region56: #{conv_layer_forward.2} parent=47 // pred_fallthru
        _
      // Predicated region
      $region57: #{conv_layer_forward.2} parent=47 // pred_check
        %p395 = pneg %p155
      $region58: #{conv_layer_forward.2} parent=47 // pred_check_branch
        %397 = sbr.rel (%p395) target = $region60
      $region59: #{conv_layer_forward.2} parent=47 // pred_region
        %p398 = scmp.lt.s32.totalorder %s22, 1
        %s399 = scalar_select %p398, %s22, 1
        %s400 = smul.addr %s399, 8
        %s401 = scalar_lea.vmem %s4, %s400
      $region60: #{conv_layer_forward.2} parent=47 // pred_fallthru
        _
    $region48: #{conv_layer_forward.2} parent=5 // pred_fallthru
      _
  $region6: #{conv_layer_forward.2} parent=0 // loop_footer
    %s15 = sadd.s32 1, %s11
  $region7: #{conv_layer_forward.2} parent=0 // loop_footer_branch
    %10 = sbr.rel target = $region3
  $region8: #{conv_layer_forward.2} parent=0 // loop_exit
    _

// kernel: conv_layer_forward.3
$region0: #{conv_layer_forward.3}
  #allocation0 [shape = 'u32[]', space=smem, size = 0x4, offset = 0x4, fixed_abs, tag = 'smem constant byte address 0x4 - core index']
  #allocation1 [shape = 'u32[72,128]{1,0:T(1,128)}', space=vmem, size = 0x9000, scoped, tag = 'internal scratch']
  %s0 = inlined_call_operand.vmem [shape: f32[2,8,256], index: 0, kind: input, shape index: {}]
  %s1 = inlined_call_operand.vmem [shape: f32[8,1], index: 1, kind: input, shape index: {}]
  %s2 = inlined_call_operand.vmem [shape: f32[8,1], index: 2, kind: input, shape index: {}]
  %s3 = inlined_call_operand.vmem [shape: f32[2,8,256], index: 3, kind: output, shape index: {}]
  %s4 = sld [smem:[#allocation0]]
  $region45: #{conv_layer_forward.3} parent=0
    _
  %s6 = ssub.s32 1, %s4
  %s7 = scalar_select 0, %s6, %s4
  loop: start=0, step=1, limit=4
  $region2: #{conv_layer_forward.3} parent=0 // loop_pre_header
    _
  $region3: #{conv_layer_forward.3} parent=0 // loop_header
    %s9 = sphi 0, %s13
    %p10 = scmp.ge.s32.totalorder %s9, 4
    %s16 = sphi 0, %s28
    %s17 = sphi 0, %s24
    %s18 = sphi 0, %s16
    %s19 = sphi 0, %s17
    %s20 = sphi 0, %s18
    %s21 = sphi 0, %s19
    %s33 = sphi 0, %s35
    %s36 = sphi 0, %s33
    %s37 = sphi 0, %s36
    %s53 = sphi 0, %s37
    %s57 = sphi 0, %s57
    %s59 = sphi 0, %s57
    %s60 = sphi 0, %s59
    %s74 = sphi 0, %s60
    %s78 = sphi 0, %s78
    %s80 = sphi 0, %s78
    %s81 = sphi 0, %s80
    %s95 = sphi 0, %s81
    %s103 = sphi 0, %s105
    %s106 = sphi 0, %s103
    %s107 = sphi 0, %s106
    %s123 = sphi 0, %s107
  $region4: #{conv_layer_forward.3} parent=0 // loop_header_branch
    %12 = sbr.rel (%p10) target = $region8
  $region5: #{conv_layer_forward.3} parent=0 // loop_body
    %s14 = ssub.s32 %s9, 1
    %s15 = ssub.s32 %s9, 2
    %s22 = sadd.s32 1, %s17
    %p23 = scmp.ge.s32.totalorder %s22, 1
    %s24 = scalar_select %p23, 0, %s22
    %s25 = sadd.s32 1, %s16
    %s26 = scalar_select %p23, %s25, %s16
    %p27 = scmp.ge.s32.totalorder %s26, 2
    %s28 = scalar_select %p27, 0, %s26
    %s29 = ssub.s32 %s16, %s28
    %s30 = ssub.s32 %s17, %s24
    %s31 = sor.u32 %s29, %s30
    %p32 = scmp.eq.s32.totalorder %s31, 0
    %s34 = sadd.s32 %s33, 1
    %s35 = scalar_select %p32, %s33, %s34
    %p38 = pneg %p32
    %p39 = scmp.eq.s32.totalorder %s9, 1
    %p40 = por %p38, %p39
    %p41 = scmp.ne.s32.totalorder %s33, %s36
    %p42 = scmp.eq.s32.totalorder %s9, 0
    %p43 = por %p41, %p42
    %p44 = scmp.ne.s32.totalorder %s33, %s36
    %p45 = scmp.eq.s32.totalorder %s14, 1
    %p46 = por %p44, %p45
    %p47 = scmp.ne.s32.totalorder %s36, %s37
    %p48 = scmp.eq.s32.totalorder %s14, 0
    %p49 = por %p47, %p48
    %p50 = scmp.ne.s32.totalorder %s36, %s37
    %p51 = scmp.eq.s32.totalorder %s15, 1
    %p52 = por %p50, %p51
    %p54 = scmp.ne.s32.totalorder %s37, %s53
    %p55 = scmp.eq.s32.totalorder %s15, 0
    %p56 = por %p54, %p55
    %s58 = sadd.s32 %s57, 1
    %p61 = scmp.eq.s32.totalorder %s9, 1
    %p62 = scmp.ne.s32.totalorder %s57, %s59
    %p63 = scmp.eq.s32.totalorder %s9, 0
    %p64 = por %p62, %p63
    %p65 = scmp.ne.s32.totalorder %s57, %s59
    %p66 = scmp.eq.s32.totalorder %s14, 1
    %p67 = por %p65, %p66
    %p68 = scmp.ne.s32.totalorder %s59, %s60
    %p69 = scmp.eq.s32.totalorder %s14, 0
    %p70 = por %p68, %p69
    %p71 = scmp.ne.s32.totalorder %s59, %s60
    %p72 = scmp.eq.s32.totalorder %s15, 1
    %p73 = por %p71, %p72
    %p75 = scmp.ne.s32.totalorder %s60, %s74
    %p76 = scmp.eq.s32.totalorder %s15, 0
    %p77 = por %p75, %p76
    %s79 = sadd.s32 %s78, 1
    %p82 = scmp.eq.s32.totalorder %s9, 1
    %p83 = scmp.ne.s32.totalorder %s78, %s80
    %p84 = scmp.eq.s32.totalorder %s9, 0
    %p85 = por %p83, %p84
    %p86 = scmp.ne.s32.totalorder %s78, %s80
    %p87 = scmp.eq.s32.totalorder %s14, 1
    %p88 = por %p86, %p87
    %p89 = scmp.ne.s32.totalorder %s80, %s81
    %p90 = scmp.eq.s32.totalorder %s14, 0
    %p91 = por %p89, %p90
    %p92 = scmp.ne.s32.totalorder %s80, %s81
    %p93 = scmp.eq.s32.totalorder %s15, 1
    %p94 = por %p92, %p93
    %p96 = scmp.ne.s32.totalorder %s81, %s95
    %p97 = scmp.eq.s32.totalorder %s15, 0
    %p98 = por %p96, %p97
    %s99 = ssub.s32 %s16, %s28
    %s100 = ssub.s32 %s17, %s24
    %s101 = sor.u32 %s99, %s100
    %p102 = scmp.eq.s32.totalorder %s101, 0
    %s104 = sadd.s32 %s103, 1
    %s105 = scalar_select %p102, %s103, %s104
    %p108 = pneg %p102
    %p109 = scmp.eq.s32.totalorder %s9, 1
    %p110 = por %p108, %p109
    %p111 = scmp.ne.s32.totalorder %s103, %s106
    %p112 = scmp.eq.s32.totalorder %s9, 0
    %p113 = por %p111, %p112
    %p114 = scmp.ne.s32.totalorder %s103, %s106
    %p115 = scmp.eq.s32.totalorder %s14, 1
    %p116 = por %p114, %p115
    %p117 = scmp.ne.s32.totalorder %s106, %s107
    %p118 = scmp.eq.s32.totalorder %s14, 0
    %p119 = por %p117, %p118
    %p120 = scmp.ne.s32.totalorder %s106, %s107
    %p121 = scmp.eq.s32.totalorder %s15, 1
    %p122 = por %p120, %p121
    %p124 = scmp.ne.s32.totalorder %s107, %s123
    %p125 = scmp.eq.s32.totalorder %s15, 0
    %p126 = por %p124, %p125
    %p127 = scmp.le.s32.totalorder 1, %s9
    %p128 = scmp.lt.s32.totalorder %s9, 3
    %p129 = pnand %p127, %p128
    %p130 = pneg %p129
    // Predicated region
    $region9: #{conv_layer_forward.3} parent=5 // pred_check
      _
    $region10: #{conv_layer_forward.3} parent=5 // pred_check_branch
      %132 = sbr.rel (%p129) target = $region12
    $region11: #{conv_layer_forward.3} parent=5 // pred_region
      %s133 = ssub.s32 %s9, 1
      // Predicated region
      $region13: #{conv_layer_forward.3} parent=11 // pred_check
        %p134 = pneg %p70
      $region14: #{conv_layer_forward.3} parent=11 // pred_check_branch
        %136 = sbr.rel (%p134) target = $region16
      $region15: #{conv_layer_forward.3} parent=11 // pred_region
        _
      $region16: #{conv_layer_forward.3} parent=11 // pred_fallthru
        _
      // Predicated region
      $region17: #{conv_layer_forward.3} parent=11 // pred_check
        %p137 = pneg %p91
      $region18: #{conv_layer_forward.3} parent=11 // pred_check_branch
        %139 = sbr.rel (%p137) target = $region20
      $region19: #{conv_layer_forward.3} parent=11 // pred_region
        _
      $region20: #{conv_layer_forward.3} parent=11 // pred_fallthru
        _
    $region12: #{conv_layer_forward.3} parent=5 // pred_fallthru
      _
    %p140 = scmp.lt.s32.totalorder %s9, 2
    // Predicated region
    $region21: #{conv_layer_forward.3} parent=5 // pred_check
      %p141 = pneg %p140
    $region22: #{conv_layer_forward.3} parent=5 // pred_check_branch
      %143 = sbr.rel (%p141) target = $region24
    $region23: #{conv_layer_forward.3} parent=5 // pred_region
      // Predicated region
      $region25: #{conv_layer_forward.3} parent=23 // pred_check
        %p144 = pneg %p43
      $region26: #{conv_layer_forward.3} parent=23 // pred_check_branch
        %146 = sbr.rel (%p144) target = $region28
      $region27: #{conv_layer_forward.3} parent=23 // pred_region
        %s147 = smul.u32 2, %s17
        %p148 = scmp.lt.s32.totalorder %s16, 1
        %s149 = scalar_select %p148, %s16, 1
        %p150 = scmp.lt.s32.totalorder %s147, 1
        %s151 = scalar_select %p150, %s147, 1
        %s152 = smul.addr %s149, 2
        %s153 = sadd.s32 %s151, %s152
        %s154 = smul.addr %s153, 8
        %s155 = scalar_lea.vmem %s0, %s154
        %s156 = smul.u32 2, %s17
      $region28: #{conv_layer_forward.3} parent=23 // pred_fallthru
        _
    $region24: #{conv_layer_forward.3} parent=5 // pred_fallthru
      _
    %p157 = scmp.le.s32.totalorder 1, %s9
    %p158 = scmp.lt.s32.totalorder %s9, 3
    %p159 = pnand %p157, %p158
    %p160 = pneg %p159
    // Predicated region
    $region29: #{conv_layer_forward.3} parent=5 // pred_check
      _
    $region30: #{conv_layer_forward.3} parent=5 // pred_check_branch
      %162 = sbr.rel (%p159) target = $region32
    $region31: #{conv_layer_forward.3} parent=5 // pred_region
      %s163 = ssub.s32 %s9, 1
      %s164 = smul.u32 2, %s19
      %p165 = scmp.lt.s32.totalorder %s18, 1
      %s166 = scalar_select %p165, %s18, 1
      %p167 = scmp.lt.s32.totalorder %s164, 1
      %s168 = scalar_select %p167, %s164, 1
      %s169 = smul.addr %s166, 2
      %s170 = sadd.s32 %s168, %s169
      %s171 = smul.addr %s170, 8
      %s172 = scalar_lea.vmem %s0, %s171
      %p173 = pneg %p49
      %p174 = pneg %p46
      %p175 = pneg %p70
      %p176 = pneg %p67
      %p177 = pneg %p91
      %p178 = pneg %p88
      %p179 = pneg %p119
      %p180 = pneg %p116
      %s181 = smul.u32 2, %s19
      %p182 = scmp.lt.s32.totalorder %s18, 1
      %s183 = scalar_select %p182, %s18, 1
      %p184 = scmp.lt.s32.totalorder %s181, 1
      %s185 = scalar_select %p184, %s181, 1
      %s186 = smul.addr %s183, 2
      %s187 = sadd.s32 %s185, %s186
      %s188 = smul.addr %s187, 8
      %s189 = scalar_lea.vmem %s3, %s188
      %s190 = smul.u32 2, %s19
      %p191 = scmp.lt.s32.totalorder %s18, 1
      %s192 = scalar_select %p191, %s18, 1
      %p193 = scmp.lt.s32.totalorder %s190, 1
      %s194 = scalar_select %p193, %s190, 1
      %s195 = smul.addr %s192, 2
      %s196 = sadd.s32 %s194, %s195
      %s197 = smul.addr %s196, 8
      %s198 = scalar_lea.vmem %s0, %s197
      %s199 = smul.u32 2, %s19
      %s200 = smul.u32 2, %s19
      %p201 = scmp.lt.s32.totalorder %s18, 1
      %s202 = scalar_select %p201, %s18, 1
      %p203 = scmp.lt.s32.totalorder %s200, 1
      %s204 = scalar_select %p203, %s200, 1
      %s205 = smul.addr %s202, 2
      %s206 = sadd.s32 %s204, %s205
      %s207 = smul.addr %s206, 8
      %s208 = scalar_lea.vmem %s3, %s207
      %s209 = smul.u32 2, %s19
      %v210 = vld [vmem:[%s198] sm:$0xff]
      %v211 = vld [vmem:[%s198 + $0x8] sm:$0xff]
      %v212 = vld [vmem:[%s1] sm:$0xff]
      %214 = vset.pattern.permute.xlu0 0
      %215 = vperm.xlu0 %214, %v212
      %v216 = vpop.permute.xlu0 %215
      %v218 = vmul.f32 %v210, %v216
      %v219 = vmul.f32 %v211, %v216
      %v220 = vld [vmem:[%s2] sm:$0xff]
      %222 = vset.pattern.permute.xlu0 0
      %223 = vperm.xlu0 %222, %v220
      %v224 = vpop.permute.xlu0 %223
      %v226 = vadd.f32 %v218, %v224
      %v227 = vadd.f32 %v219, %v224
      %v228 = vmul.f32 %v226, 0.1
      %v229 = vmul.f32 %v227, 0.1
      %v230 = vmax.f32 %v226, %v228
      %v231 = vmax.f32 %v227, %v229
      %232 = vst [vmem:[%s208] sm:$0xff] %v230
      %233 = vst [vmem:[%s208 + $0x8] sm:$0xff] %v231
      %s234 = smul.u32 2, %s19
      %p235 = scmp.lt.s32.totalorder %s18, 1
      %s236 = scalar_select %p235, %s18, 1
      %p237 = scmp.lt.s32.totalorder %s234, 1
      %s238 = scalar_select %p237, %s234, 1
      %s239 = smul.addr %s236, 2
      %s240 = sadd.s32 %s238, %s239
      %s241 = smul.addr %s240, 8
      %s242 = scalar_lea.vmem %s3, %s241
      // Predicated region
      $region33: #{conv_layer_forward.3} parent=31 // pred_check
        %p243 = pneg %p116
      $region34: #{conv_layer_forward.3} parent=31 // pred_check_branch
        %245 = sbr.rel (%p243) target = $region36
      $region35: #{conv_layer_forward.3} parent=31 // pred_region
        %s246 = smul.u32 2, %s19
      $region36: #{conv_layer_forward.3} parent=31 // pred_fallthru
        _
    $region32: #{conv_layer_forward.3} parent=5 // pred_fallthru
      _
    %p247 = scmp.le.s32.totalorder 2, %s9
    // Predicated region
    $region37: #{conv_layer_forward.3} parent=5 // pred_check
      %p248 = pneg %p247
    $region38: #{conv_layer_forward.3} parent=5 // pred_check_branch
      %250 = sbr.rel (%p248) target = $region40
    $region39: #{conv_layer_forward.3} parent=5 // pred_region
      %s251 = ssub.s32 %s9, 2
      // Predicated region
      $region41: #{conv_layer_forward.3} parent=39 // pred_check
        %p252 = pneg %p122
      $region42: #{conv_layer_forward.3} parent=39 // pred_check_branch
        %254 = sbr.rel (%p252) target = $region44
      $region43: #{conv_layer_forward.3} parent=39 // pred_region
        %s255 = smul.u32 2, %s21
        %p256 = scmp.lt.s32.totalorder %s20, 1
        %s257 = scalar_select %p256, %s20, 1
        %p258 = scmp.lt.s32.totalorder %s255, 1
        %s259 = scalar_select %p258, %s255, 1
        %s260 = smul.addr %s257, 2
        %s261 = sadd.s32 %s259, %s260
        %s262 = smul.addr %s261, 8
        %s263 = scalar_lea.vmem %s3, %s262
      $region44: #{conv_layer_forward.3} parent=39 // pred_fallthru
        _
    $region40: #{conv_layer_forward.3} parent=5 // pred_fallthru
      _
  $region6: #{conv_layer_forward.3} parent=0 // loop_footer
    %s13 = sadd.s32 1, %s9
  $region7: #{conv_layer_forward.3} parent=0 // loop_footer_branch
    %8 = sbr.rel target = $region3
  $region8: #{conv_layer_forward.3} parent=0 // loop_exit
    _

</llo_original>
